<compile_context>
chip_gen: v6e
topology: v6e:2x2x1
jax: 0.10.0
libtpu: 0.0.40
codegen_flags: <defaults>
</compile_context>

<pallas_src>
from functools import partial

import jax
import jax.numpy as jnp
from jax.experimental import pallas as pl
from jax.experimental.pallas import tpu as pltpu


def _laa_kernel(qp_ref, v_ref, taps_ref, wv_ref, wc_ref, badd_ref, ws_ref,
                bs_ref, ctx_ref, attn_ref, *, smoothing):
    # qp_ref:   (Bb, q_len, H)  hoisted query projection (f32), q_len in {1, T}
    # v_ref:    (Bb, T, H)      encoder features for this batch block
    # taps_ref: (Bb, T, 3)      im2col'd last_attn windows (kernel=3, pad=1)
    # wv_ref:   (H, H)          value projection, already transposed (x @ Wv^T)
    # wc_ref:   (3, H)          conv taps, wc[k, h] = conv_weight[h, 0, k]
    # badd_ref: (1, H)          conv bias + module bias (pre-summed, f32)
    # ws_ref:   (1, H)          score_proj weight (f32)
    # bs_ref:   (1,)  SMEM      score_proj bias (scalar)
    # ctx_ref:  (Bb, H)         context output (sublane/lane-dense)
    # attn_ref: (Bb, T)         attention output (sublane/lane-dense)
    Bb, T, H = v_ref.shape

    v = v_ref[...]                                                   # (Bb, T, H)

    # Value projection: one (Bb*T, H) @ (H, H) MXU matmul, f32 accumulate.
    vp = jnp.dot(v.reshape(Bb * T, H), wv_ref[...],
                 preferred_element_type=jnp.float32).reshape(Bb, T, H)

    # k=3 / pad=1 conv over last_attn as three VPU FMAs (VALU has slack under the
    # projection matmul; avoids a padded K=3 MXU contraction).
    taps = taps_ref[...]                                             # (Bb, T, 3)
    wc = wc_ref[...]                                                 # (3, H)
    conv = (taps[:, :, 0:1] * wc[0:1, :]
            + taps[:, :, 1:2] * wc[1:2, :]
            + taps[:, :, 2:3] * wc[2:3, :])                          # (Bb, T, H)

    # energy = tanh(Wq q + Wv v + conv + conv_b + bias); Wq q hoisted to the wrapper,
    # conv_b + bias pre-summed into badd.
    energy = jnp.tanh(vp + conv + qp_ref[...] + badd_ref[...])       # (Bb, T, H) f32

    # score: VPU broadcast-multiply + lane reduce over H (keeps the M=1 contraction
    # off the MXU).  Result is (Bb, T): sublane x lane dense, matching attn_ref.
    score = jnp.sum(energy * ws_ref[...], axis=-1) + bs_ref[0]       # (Bb, T)

    if smoothing:
        s = jax.nn.sigmoid(score)
        attn = s * pl.reciprocal(jnp.sum(s, axis=-1, keepdims=True))
    else:
        m = jnp.max(score, axis=-1, keepdims=True)
        e = jnp.exp(score - m)
        attn = e * pl.reciprocal(jnp.sum(e, axis=-1, keepdims=True))

    attn_ref[...] = attn.astype(attn_ref.dtype)

    # context = attn @ value per row, computed as a weighted sum over T
    # (VPU multiply + sublane reduce; avoids Bb separate M=1 MXU matmuls).
    ctx = jnp.sum(attn[:, :, None] * v, axis=1)                      # (Bb, H) f32
    ctx_ref[...] = ctx.astype(ctx_ref.dtype)


def _round_up(x, m):
    return -(-x // m) * m


def _choose_block_b(B, q_len, T, H, itemsize):
    """Batch rows per grid step sized so the working set stays well inside the
    32 MiB scoped-VMEM default (safe on v5e / v6e / v7x)."""
    lane, sub = 128, 8
    Tp, Hp = _round_up(T, sub), _round_up(max(H, 1), lane)
    Qp = _round_up(q_len, sub)
    per_row = (
        2 * Tp * Hp * itemsize           # value block, double-buffered
        + 2 * Tp * lane * itemsize       # im2col taps (3 lanes padded to 128)
        + 2 * Qp * Hp * 4                # hoisted query projection (f32)
        + 6 * Tp * Hp * 4                # in-kernel f32 temporaries (vp/conv/energy/...)
        + 4 * (Hp + _round_up(T, lane))  # outputs
    )
    budget = 24 * 1024 * 1024
    return int(max(1, budget // max(per_row, 1)))


def location_aware_attention(query, value, last_attn, params, *,
                             smoothing=True, block_b=None):
    """Fused location-aware attention.

    query:     (B, q_len, H) with q_len in {1, v_len}
    value:     (B, T, H)
    last_attn: (B, T) or None
    params: dict with
        conv_w (H, 1, 3), conv_b (H,), wq (H, H), wv (H, H),
        ws (1, H), bs (1,), bias (H,)
    returns (context (B, H), attn (B, T)) -- matches the PyTorch module's forward.
    """
    B, q_len, H = query.shape
    T = value.shape[1]
    assert value.shape == (B, T, H)
    assert q_len in (1, T), "query length must broadcast against value length"
    # TODO(synk): general q_len broadcasting beyond {1, v_len} (PyTorch would also fail there).

    dtype = value.dtype
    if last_attn is None:
        last_attn = jnp.zeros((B, T), dtype=dtype)

    # Hoisted query projection: one XLA (B*q_len, H) @ (H, H) matmul.  Removes the
    # per-step M=1 (or M=T) matmul and keeps Wq^T out of resident VMEM.
    qp = (query.reshape(B * q_len, H) @ jnp.transpose(params["wq"]))
    qp = qp.reshape(B, q_len, H).astype(jnp.float32)

    # im2col of last_attn for the kernel=3 / pad=1 conv (tiny (B, T, 3) tensor).
    la_pad = jnp.pad(last_attn, ((0, 0), (1, 1)))
    taps = jnp.stack([la_pad[:, k:k + T] for k in range(3)], axis=-1)     # (B, T, 3)

    wv_t = jnp.transpose(params["wv"])                                    # (H, H)
    wc = jnp.transpose(params["conv_w"][:, 0, :]).astype(jnp.float32)     # (3, H)
    badd = (params["conv_b"] + params["bias"]).reshape(1, H).astype(jnp.float32)
    ws = params["ws"].reshape(1, H).astype(jnp.float32)
    bs = params["bs"].reshape(1).astype(jnp.float32)

    itemsize = jnp.dtype(dtype).itemsize

    # Batch block size.
    if block_b is None:
        bb = _choose_block_b(B, q_len, T, H, itemsize)
        if B >= 16:
            # Keep >= 2 grid steps so both v7x TensorCores get work.
            bb = min(bb, max(8, (B // 2 // 8) * 8))
    else:
        bb = int(block_b)

    if bb >= B:
        bb, Bp = B, B                 # single step; block == full dim, no (8) constraint
    else:
        bb = max(8, (bb // 8) * 8)    # sublane-dense output blocks
        Bp = _round_up(B, bb)

    if Bp != B:
        pad = ((0, Bp - B),)
        qp = jnp.pad(qp, pad + ((0, 0), (0, 0)))
        value_p = jnp.pad(value, pad + ((0, 0), (0, 0)))
        taps = jnp.pad(taps, pad + ((0, 0), (0, 0)))
    else:
        value_p = value

    grid = (Bp // bb,)

    flops = int(2 * Bp * T * H * (H + 3 + 1 + 1))
    bytes_accessed = int(
        qp.size * 4 + value_p.size * itemsize + taps.size * itemsize
        + (wv_t.size) * itemsize + (wc.size + badd.size + ws.size + bs.size) * 4
        + Bp * (H + T) * itemsize)

    kernel = partial(_laa_kernel, smoothing=smoothing)

    ctx, attn = pl.pallas_call(
        kernel,
        out_shape=(jax.ShapeDtypeStruct((Bp, H), dtype),
                   jax.ShapeDtypeStruct((Bp, T), dtype)),
        grid_spec=pltpu.PrefetchScalarGridSpec(
            num_scalar_prefetch=0,
            grid=grid,
            in_specs=[
                pl.BlockSpec((bb, q_len, H), lambda b: (b, 0, 0)),        # hoisted Wq q
                pl.BlockSpec((bb, T, H), lambda b: (b, 0, 0)),            # value
                pl.BlockSpec((bb, T, 3), lambda b: (b, 0, 0)),            # last_attn taps
                pl.BlockSpec((H, H), lambda b: (0, 0)),                   # Wv^T (resident)
                pl.BlockSpec((3, H), lambda b: (0, 0)),                   # conv taps
                pl.BlockSpec((1, H), lambda b: (0, 0)),                   # fused biases
                pl.BlockSpec((1, H), lambda b: (0, 0)),                   # score weight
                pl.BlockSpec(memory_space=pltpu.MemorySpace.SMEM),        # score bias
            ],
            out_specs=[
                pl.BlockSpec((bb, H), lambda b: (b, 0)),                  # context
                pl.BlockSpec((bb, T), lambda b: (b, 0)),                  # attn
            ],
        ),
        compiler_params=pltpu.CompilerParams(
            dimension_semantics=("parallel",),
            vmem_limit_bytes=32 * 1024 * 1024),
        cost_estimate=pl.CostEstimate(
            flops=flops,
            transcendentals=int(Bp * T * (H + 1)),
            bytes_accessed=bytes_accessed),
    )(qp, value_p, taps, wv_t, wc, badd, ws, bs)

    return ctx[:B], attn[:B]


def _reference(query, value, last_attn, params, *, smoothing=True):
    """Pure-JAX replica of the PyTorch forward (for correctness check)."""
    B, q_len, H = query.shape
    T = value.shape[1]
    if last_attn is None:
        last_attn = jnp.zeros((B, T), dtype=value.dtype)
    conv = jax.lax.conv_general_dilated(
        last_attn[:, None, :], params["conv_w"], window_strides=(1,),
        padding=((1, 1),), dimension_numbers=("NCH", "OIH", "NCH"))      # (B, H, T)
    conv = conv + params["conv_b"][None, :, None]
    conv_attn = jnp.transpose(conv, (0, 2, 1))                            # (B, T, H)
    qp = query @ params["wq"].T
    vp = value @ params["wv"].T
    energy = jnp.tanh(qp + vp + conv_attn + params["bias"])
    score = (energy @ params["ws"].T + params["bs"])[..., 0]              # (B, T)
    if smoothing:
        s = jax.nn.sigmoid(score)
        attn = s / jnp.sum(s, axis=-1, keepdims=True)
    else:
        attn = jax.nn.softmax(score, axis=-1)
    context = jnp.einsum('bt,bth->bh', attn, value)
    return context, attn


if __name__ == "__main__":
    # Module config: LocationAwareAttention(hidden_dim=32, smoothing=True)
    B, T, H = 2, 16, 32
    key = jax.random.PRNGKey(0)
    ks = jax.random.split(key, 12)

    query = jax.random.normal(ks[0], (B, 1, H), dtype=jnp.float32)       # decoder step
    value = jax.random.normal(ks[1], (B, T, H), dtype=jnp.float32)       # encoder outputs
    last_attn = jax.nn.softmax(
        jax.random.normal(ks[2], (B, T), dtype=jnp.float32), axis=-1)

    params = dict(
        conv_w=0.1 * jax.random.normal(ks[3], (H, 1, 3), dtype=jnp.float32),
        conv_b=0.01 * jax.random.normal(ks[4], (H,), dtype=jnp.float32),
        wq=0.1 * jax.random.normal(ks[5], (H, H), dtype=jnp.float32),
        wv=0.1 * jax.random.normal(ks[6], (H, H), dtype=jnp.float32),
        ws=0.1 * jax.random.normal(ks[7], (1, H), dtype=jnp.float32),
        bs=jnp.zeros((1,), dtype=jnp.float32),
        bias=jax.random.uniform(ks[8], (H,), jnp.float32, -0.1, 0.1),
    )

    for smoothing in (True, False):
        ctx, attn = location_aware_attention(query, value, last_attn, params,
                                             smoothing=smoothing)
        ctx = jax.block_until_ready(ctx)
        attn = jax.block_until_ready(attn)
        ctx_ref, attn_ref = _reference(query, value, last_attn, params,
                                       smoothing=smoothing)
        assert ctx.shape == (B, H), ctx.shape
        assert attn.shape == (B, T), attn.shape
        assert jnp.allclose(ctx, ctx_ref, atol=1e-5, rtol=1e-5), \
            float(jnp.max(jnp.abs(ctx - ctx_ref)))
        assert jnp.allclose(attn, attn_ref, atol=1e-5, rtol=1e-5), \
            float(jnp.max(jnp.abs(attn - attn_ref)))

    # Exercise the last_attn=None path (module zero-initializes the alignment).
    ctx0, attn0 = location_aware_attention(query, value, None, params)
    jax.block_until_ready(ctx0)
    ctx0_ref, attn0_ref = _reference(query, value, None, params)
    assert jnp.allclose(ctx0, ctx0_ref, atol=1e-5, rtol=1e-5)
    assert jnp.allclose(attn0, attn0_ref, atol=1e-5, rtol=1e-5)

    # Exercise the batch-blocked / padded multi-step grid path (B=20, Bb=8 -> 3 steps).
    Bn = 20
    qb = jax.random.normal(ks[9], (Bn, 1, H), dtype=jnp.float32)
    vb = jax.random.normal(ks[10], (Bn, T, H), dtype=jnp.float32)
    lab = jax.nn.softmax(
        jax.random.normal(ks[11], (Bn, T), dtype=jnp.float32), axis=-1)
    ctxb, attnb = location_aware_attention(qb, vb, lab, params,
                                           smoothing=True, block_b=8)
    jax.block_until_ready(ctxb)
    ctxb_ref, attnb_ref = _reference(qb, vb, lab, params, smoothing=True)
    assert ctxb.shape == (Bn, H) and attnb.shape == (Bn, T)
    assert jnp.allclose(ctxb, ctxb_ref, atol=1e-5, rtol=1e-5), \
        float(jnp.max(jnp.abs(ctxb - ctxb_ref)))
    assert jnp.allclose(attnb, attnb_ref, atol=1e-5, rtol=1e-5), \
        float(jnp.max(jnp.abs(attnb - attnb_ref)))

    print("KERNEL_OK")
</pallas_src>

<mosaic_0001>
module attributes {stable_mosaic.version = 11 : i64} {
  func.func @_laa_kernel(%arg0: i32, %arg1: memref<2x1x32xf32, #tpu.memory_space<vmem>>, %arg2: memref<2x16x32xf32, #tpu.memory_space<vmem>>, %arg3: memref<2x16x3xf32, #tpu.memory_space<vmem>>, %arg4: memref<32x32xf32, #tpu.memory_space<vmem>>, %arg5: memref<3x32xf32, #tpu.memory_space<vmem>>, %arg6: memref<1x32xf32, #tpu.memory_space<vmem>>, %arg7: memref<1x32xf32, #tpu.memory_space<vmem>>, %arg8: memref<1xf32, #tpu.memory_space<smem>>, %arg9: memref<2x32xf32, #tpu.memory_space<vmem>>, %arg10: memref<2x16xf32, #tpu.memory_space<vmem>>) attributes {dimension_semantics = [#tpu.dimension_semantics<parallel>], iteration_bounds = array<i64: 1>, scalar_prefetch = 0 : i64, scratch_operands = 0 : i64, tpu.core_type = #tpu.core_type<tc>, window_params = [{transform_indices = @transform_0, window_bounds = array<i64: 2, 1, 32>}, {transform_indices = @transform_1, window_bounds = array<i64: 2, 16, 32>}, {transform_indices = @transform_2, window_bounds = array<i64: 2, 16, 3>}, {pipeline_mode = #tpu.pipeline_mode<synchronous>, transform_indices = @transform_3, window_bounds = array<i64: 32, 32>}, {pipeline_mode = #tpu.pipeline_mode<synchronous>, transform_indices = @transform_4, window_bounds = array<i64: 3, 32>}, {pipeline_mode = #tpu.pipeline_mode<synchronous>, transform_indices = @transform_5, window_bounds = array<i64: 1, 32>}, {pipeline_mode = #tpu.pipeline_mode<synchronous>, transform_indices = @transform_6, window_bounds = array<i64: 1, 32>}, {transform_indices = @transform_7, window_bounds = array<i64: 1>}, {transform_indices = @transform_8, window_bounds = array<i64: 2, 32>}, {transform_indices = @transform_9, window_bounds = array<i64: 2, 16>}]} {
    %c0 = arith.constant 0 : index
    %c0_0 = arith.constant 0 : index
    %c0_1 = arith.constant 0 : index
    %0 = vector.load %arg2[%c0, %c0_0, %c0_1] : memref<2x16x32xf32, #tpu.memory_space<vmem>>, vector<2x16x32xf32>
    %1 = vector.shape_cast %0 : vector<2x16x32xf32> to vector<32x32xf32>
    %c0_2 = arith.constant 0 : index
    %c0_3 = arith.constant 0 : index
    %2 = vector.load %arg4[%c0_2, %c0_3] : memref<32x32xf32, #tpu.memory_space<vmem>>, vector<32x32xf32>
    %cst = arith.constant dense<0.000000e+00> : vector<32x32xf32>
    %3 = tpu.matmul %1, %2, %cst {dimension_numbers = #tpu.dot_dimension_numbers<[1], [0], [0], [1], [0, 0, 1, 1], [], []>} : vector<32x32xf32>, vector<32x32xf32>, vector<32x32xf32> -> vector<32x32xf32>
    %4 = vector.shape_cast %3 : vector<32x32xf32> to vector<2x16x32xf32>
    %c0_4 = arith.constant 0 : index
    %c0_5 = arith.constant 0 : index
    %c0_6 = arith.constant 0 : index
    %5 = vector.load %arg3[%c0_4, %c0_5, %c0_6] : memref<2x16x3xf32, #tpu.memory_space<vmem>>, vector<2x16x3xf32>
    %c0_7 = arith.constant 0 : index
    %c0_8 = arith.constant 0 : index
    %6 = vector.load %arg5[%c0_7, %c0_8] : memref<3x32xf32, #tpu.memory_space<vmem>>, vector<3x32xf32>
    %7 = vector.extract_strided_slice %5 {offsets = [0, 0, 0], sizes = [2, 16, 1], strides = [1, 1, 1]} : vector<2x16x3xf32> to vector<2x16x1xf32>
    %8 = vector.extract_strided_slice %6 {offsets = [0, 0], sizes = [1, 32], strides = [1, 1]} : vector<3x32xf32> to vector<1x32xf32>
    %9 = vector.shape_cast %8 : vector<1x32xf32> to vector<1x1x32xf32>
    %10 = vector.broadcast %7 : vector<2x16x1xf32> to vector<2x16x32xf32>
    %11 = vector.broadcast %9 : vector<1x1x32xf32> to vector<2x16x32xf32>
    %12 = arith.mulf %10, %11 : vector<2x16x32xf32>
    %13 = vector.extract_strided_slice %5 {offsets = [0, 0, 1], sizes = [2, 16, 1], strides = [1, 1, 1]} : vector<2x16x3xf32> to vector<2x16x1xf32>
    %14 = vector.extract_strided_slice %6 {offsets = [1, 0], sizes = [1, 32], strides = [1, 1]} : vector<3x32xf32> to vector<1x32xf32>
    %15 = vector.shape_cast %14 : vector<1x32xf32> to vector<1x1x32xf32>
    %16 = vector.broadcast %13 : vector<2x16x1xf32> to vector<2x16x32xf32>
    %17 = vector.broadcast %15 : vector<1x1x32xf32> to vector<2x16x32xf32>
    %18 = arith.mulf %16, %17 : vector<2x16x32xf32>
    %19 = arith.addf %12, %18 : vector<2x16x32xf32>
    %20 = vector.extract_strided_slice %5 {offsets = [0, 0, 2], sizes = [2, 16, 1], strides = [1, 1, 1]} : vector<2x16x3xf32> to vector<2x16x1xf32>
    %21 = vector.extract_strided_slice %6 {offsets = [2, 0], sizes = [1, 32], strides = [1, 1]} : vector<3x32xf32> to vector<1x32xf32>
    %22 = vector.shape_cast %21 : vector<1x32xf32> to vector<1x1x32xf32>
    %23 = vector.broadcast %20 : vector<2x16x1xf32> to vector<2x16x32xf32>
    %24 = vector.broadcast %22 : vector<1x1x32xf32> to vector<2x16x32xf32>
    %25 = arith.mulf %23, %24 : vector<2x16x32xf32>
    %26 = arith.addf %19, %25 : vector<2x16x32xf32>
    %27 = arith.addf %4, %26 : vector<2x16x32xf32>
    %c0_9 = arith.constant 0 : index
    %c0_10 = arith.constant 0 : index
    %c0_11 = arith.constant 0 : index
    %28 = vector.load %arg1[%c0_9, %c0_10, %c0_11] : memref<2x1x32xf32, #tpu.memory_space<vmem>>, vector<2x1x32xf32>
    %29 = vector.broadcast %28 : vector<2x1x32xf32> to vector<2x16x32xf32>
    %30 = arith.addf %27, %29 : vector<2x16x32xf32>
    %c0_12 = arith.constant 0 : index
    %c0_13 = arith.constant 0 : index
    %31 = vector.load %arg6[%c0_12, %c0_13] : memref<1x32xf32, #tpu.memory_space<vmem>>, vector<1x32xf32>
    %32 = vector.shape_cast %31 : vector<1x32xf32> to vector<1x1x32xf32>
    %33 = vector.broadcast %32 : vector<1x1x32xf32> to vector<2x16x32xf32>
    %34 = arith.addf %30, %33 : vector<2x16x32xf32>
    %35 = math.tanh %34 : vector<2x16x32xf32>
    %c0_14 = arith.constant 0 : index
    %c0_15 = arith.constant 0 : index
    %36 = vector.load %arg7[%c0_14, %c0_15] : memref<1x32xf32, #tpu.memory_space<vmem>>, vector<1x32xf32>
    %37 = vector.shape_cast %36 : vector<1x32xf32> to vector<1x1x32xf32>
    %38 = vector.broadcast %37 : vector<1x1x32xf32> to vector<2x16x32xf32>
    %39 = arith.mulf %35, %38 : vector<2x16x32xf32>
    %cst_16 = arith.constant dense<0.000000e+00> : vector<2x16xf32>
    %40 = vector.multi_reduction <add>, %39, %cst_16 [2] : vector<2x16x32xf32> to vector<2x16xf32>
    %c0_17 = arith.constant 0 : index
    %41 = memref.load %arg8[%c0_17] : memref<1xf32, #tpu.memory_space<smem>>
    %42 = vector.broadcast %41 : f32 to vector<2x16xf32>
    %43 = arith.addf %40, %42 : vector<2x16xf32>
    %44 = arith.negf %43 : vector<2x16xf32>
    %45 = math.exp %44 : vector<2x16xf32>
    %cst_18 = arith.constant 1.000000e+00 : f32
    %46 = vector.broadcast %cst_18 : f32 to vector<2x16xf32>
    %47 = arith.addf %46, %45 : vector<2x16xf32>
    %48 = arith.divf %46, %47 : vector<2x16xf32>
    %cst_19 = arith.constant dense<0.000000e+00> : vector<2xf32>
    %49 = vector.multi_reduction <add>, %48, %cst_19 [1] : vector<2x16xf32> to vector<2xf32>
    %50 = vector.shape_cast %49 : vector<2xf32> to vector<2x1xf32>
    %51 = tpu.reciprocal %50 : vector<2x1xf32> -> vector<2x1xf32>
    %52 = vector.broadcast %51 : vector<2x1xf32> to vector<2x16xf32>
    %53 = arith.mulf %48, %52 : vector<2x16xf32>
    %c0_20 = arith.constant 0 : index
    %c0_21 = arith.constant 0 : index
    %54 = vector.load %arg10[%c0_20, %c0_21] : memref<2x16xf32, #tpu.memory_space<vmem>>, vector<2x16xf32>
    tpu.vector_store %arg10[%c0_20, %c0_21], %53 {strides = array<i32>} : memref<2x16xf32, #tpu.memory_space<vmem>>, vector<2x16xf32>,
    %55 = vector.shape_cast %53 : vector<2x16xf32> to vector<2x16x1xf32>
    %56 = vector.broadcast %55 : vector<2x16x1xf32> to vector<2x16x32xf32>
    %57 = arith.mulf %56, %0 : vector<2x16x32xf32>
    %cst_22 = arith.constant dense<0.000000e+00> : vector<2x32xf32>
    %58 = vector.multi_reduction <add>, %57, %cst_22 [1] : vector<2x16x32xf32> to vector<2x32xf32>
    %c0_23 = arith.constant 0 : index
    %c0_24 = arith.constant 0 : index
    %59 = vector.load %arg9[%c0_23, %c0_24] : memref<2x32xf32, #tpu.memory_space<vmem>>, vector<2x32xf32>
    tpu.vector_store %arg9[%c0_23, %c0_24], %58 {strides = array<i32>} : memref<2x32xf32, #tpu.memory_space<vmem>>, vector<2x32xf32>,
    return
  }
  func.func @transform_0(%arg0: i32) -> (i32, i32, i32) {
    %c0_i32 = arith.constant 0 : i32
    %c0_i32_0 = arith.constant 0 : i32
    %c0_i32_1 = arith.constant 0 : i32
    return %arg0, %c0_i32, %c0_i32_0 : i32, i32, i32
  }
  func.func @transform_1(%arg0: i32) -> (i32, i32, i32) {
    %c0_i32 = arith.constant 0 : i32
    %c0_i32_0 = arith.constant 0 : i32
    %c0_i32_1 = arith.constant 0 : i32
    return %arg0, %c0_i32, %c0_i32_0 : i32, i32, i32
  }
  func.func @transform_2(%arg0: i32) -> (i32, i32, i32) {
    %c0_i32 = arith.constant 0 : i32
    %c0_i32_0 = arith.constant 0 : i32
    %c0_i32_1 = arith.constant 0 : i32
    return %arg0, %c0_i32, %c0_i32_0 : i32, i32, i32
  }
  func.func @transform_3(%arg0: i32) -> (i32, i32) {
    %c0_i32 = arith.constant 0 : i32
    %c0_i32_0 = arith.constant 0 : i32
    %c0_i32_1 = arith.constant 0 : i32
    return %c0_i32, %c0_i32_0 : i32, i32
  }
  func.func @transform_4(%arg0: i32) -> (i32, i32) {
    %c0_i32 = arith.constant 0 : i32
    %c0_i32_0 = arith.constant 0 : i32
    %c0_i32_1 = arith.constant 0 : i32
    return %c0_i32, %c0_i32_0 : i32, i32
  }
  func.func @transform_5(%arg0: i32) -> (i32, i32) {
    %c0_i32 = arith.constant 0 : i32
    %c0_i32_0 = arith.constant 0 : i32
    %c0_i32_1 = arith.constant 0 : i32
    return %c0_i32, %c0_i32_0 : i32, i32
  }
  func.func @transform_6(%arg0: i32) -> (i32, i32) {
    %c0_i32 = arith.constant 0 : i32
    %c0_i32_0 = arith.constant 0 : i32
    %c0_i32_1 = arith.constant 0 : i32
    return %c0_i32, %c0_i32_0 : i32, i32
  }
  func.func @transform_7(%arg0: i32) -> i32 {
    %c0_i32 = arith.constant 0 : i32
    %c0_i32_0 = arith.constant 0 : i32
    return %c0_i32 : i32
  }
  func.func @transform_8(%arg0: i32) -> (i32, i32) {
    %c0_i32 = arith.constant 0 : i32
    %c0_i32_0 = arith.constant 0 : i32
    return %arg0, %c0_i32 : i32, i32
  }
  func.func @transform_9(%arg0: i32) -> (i32, i32) {
    %c0_i32 = arith.constant 0 : i32
    %c0_i32_0 = arith.constant 0 : i32
    return %arg0, %c0_i32 : i32, i32
  }
}

</mosaic_0001>

<llo_original>
// kernel: tpu_custom_call.1
$region0: #{tpu_custom_call.1}
  #allocation0 [shape = 'u32[]', space=smem, size = 0x4, offset = 0x4, fixed_abs, tag = 'smem constant byte address 0x4 - core index']
  #allocation1 [shape = 'u32[144,128]{1,0:T(1,128)}', space=vmem, size = 0x12000, scoped, tag = 'internal scratch']
  #allocation2 [shape = 'f32[1]{0:T(128)S(6)}', space=smem, size = 0x200, scoped, tag = 'scoped memory for tpu_custom_call.1']
  %s0 = inlined_call_operand.vmem [shape: f32[2,1,32], index: 0, kind: input, shape index: {}]
  %s1 = inlined_call_operand.vmem [shape: f32[2,16,32], index: 1, kind: input, shape index: {}]
  %s2 = inlined_call_operand.vmem [shape: f32[2,16,3], index: 2, kind: input, shape index: {}]
  %s3 = inlined_call_operand.hbm [shape: f32[32,32], index: 3, kind: input, shape index: {}]
  %s4 = inlined_call_operand.vmem [shape: f32[3,32], index: 4, kind: input, shape index: {}]
  %s5 = inlined_call_operand.vmem [shape: f32[1,32], index: 5, kind: input, shape index: {}]
  %s6 = inlined_call_operand.vmem [shape: f32[1,32], index: 6, kind: input, shape index: {}]
  %s7 = inlined_call_operand.<no memory space> [shape: f32[1], index: 7, kind: input, shape index: {}]
  %s8 = inlined_call_operand.hbm [shape: f32[2,32], index: 8, kind: output, shape index: {0}]
  %s9 = inlined_call_operand.hbm [shape: f32[2,16], index: 9, kind: output, shape index: {1}]
  %10 = xla_tuple %s8, %s9
  %s11 = sld [smem:[#allocation0]]
  $region54: #{tpu_custom_call.1} parent=0
    _
  %s13 = ssub.s32 1, %s11
  %s14 = scalar_select 0, %s13, %s11
  %15 = sst [smem:[#allocation2]] %s7
  $region1: #{tpu_custom_call.1} parent=0
    #allocation3 [shape = 'u8[16384]{0}', space=vmem, size = 0x4000, scoped, tag = 'input window, operand 3, single buffered']
    #allocation4 [shape = 's32[1]{0}', space=sflag, size = 0x4, scoped, tag = 'scoped memory for tpu_custom_call.1']
    #allocation5 [shape = 's32[1]{0}', space=sflag, size = 0x4, scoped, tag = 'scoped memory for tpu_custom_call.1']
    #allocation6 [shape = 'u8[1024]{0}', space=vmem, size = 0x400, scoped, tag = 'output window, operand 0, single buffered']
    #allocation7 [shape = 'u8[1024]{0}', space=vmem, size = 0x400, scoped, tag = 'output window, operand 1, single buffered']
    #allocation8 [shape = 's32[1]{0}', space=sflag, size = 0x4, scoped, tag = 'scoped memory for tpu_custom_call.1']
    %16 = vsyncpa [#allocation4], 0
    %17 = vsyncpa [#allocation5], 0
    %18 = vsyncpa [#allocation8], 0
    // Predicated region
    $region2: #{tpu_custom_call.1} parent=1 // pred_check
      _
    $region3: #{tpu_custom_call.1} parent=1 // pred_check_branch
      %20 = sbr.rel (0) target = $region5
    $region4: #{tpu_custom_call.1} parent=1 // pred_region
      _
    $region5: #{tpu_custom_call.1} parent=1 // pred_fallthru
      _
    // Predicated region
    $region6: #{tpu_custom_call.1} parent=1 // pred_check
      _
    $region7: #{tpu_custom_call.1} parent=1 // pred_check_branch
      %22 = sbr.rel (0) target = $region9
    $region8: #{tpu_custom_call.1} parent=1 // pred_region
      _
    $region9: #{tpu_custom_call.1} parent=1 // pred_fallthru
      _
    // Predicated region
    $region10: #{tpu_custom_call.1} parent=1 // pred_check
      _
    $region11: #{tpu_custom_call.1} parent=1 // pred_check_branch
      %24 = sbr.rel (0) target = $region13
    $region12: #{tpu_custom_call.1} parent=1 // pred_region
      _
    $region13: #{tpu_custom_call.1} parent=1 // pred_fallthru
      _
    // Predicated region
    $region14: #{tpu_custom_call.1} parent=1 // pred_check
      _
    $region15: #{tpu_custom_call.1} parent=1 // pred_check_branch
      %26 = sbr.rel (0) target = $region17
    $region16: #{tpu_custom_call.1} parent=1 // pred_region
      %s28 = ssub.s32 512, 512
      %29 = vsyncadd [#allocation4], %s28
      %s30 = sshll.u32 [#allocation3], 4
      %s31 = int_to_ptr.vmem [resolvable:$true] %s30
      %36 = dma.hbm_to_vmem [thread:$0]  %s3, 512, %s31, [#allocation4], 128, 128, 8
    $region17: #{tpu_custom_call.1} parent=1 // pred_fallthru
      _
    // Predicated region
    $region18: #{tpu_custom_call.1} parent=1 // pred_check
      _
    $region19: #{tpu_custom_call.1} parent=1 // pred_check_branch
      %38 = sbr.rel (0) target = $region21
    $region20: #{tpu_custom_call.1} parent=1 // pred_region
      _
    $region21: #{tpu_custom_call.1} parent=1 // pred_fallthru
      _
    // Predicated region
    $region22: #{tpu_custom_call.1} parent=1 // pred_check
      _
    $region23: #{tpu_custom_call.1} parent=1 // pred_check_branch
      %40 = sbr.rel (0) target = $region25
    $region24: #{tpu_custom_call.1} parent=1 // pred_region
      _
    $region25: #{tpu_custom_call.1} parent=1 // pred_fallthru
      _
    // Predicated region
    $region26: #{tpu_custom_call.1} parent=1 // pred_check
      _
    $region27: #{tpu_custom_call.1} parent=1 // pred_check_branch
      %42 = sbr.rel (0) target = $region29
    $region28: #{tpu_custom_call.1} parent=1 // pred_region
      _
    $region29: #{tpu_custom_call.1} parent=1 // pred_fallthru
      _
    // Predicated region
    $region30: #{tpu_custom_call.1} parent=1 // pred_check
      _
    $region31: #{tpu_custom_call.1} parent=1 // pred_check_branch
      %44 = sbr.rel (0) target = $region33
    $region32: #{tpu_custom_call.1} parent=1 // pred_region
      _
    $region33: #{tpu_custom_call.1} parent=1 // pred_fallthru
      _
    // Predicated region
    $region34: #{tpu_custom_call.1} parent=1 // pred_check
      _
    $region35: #{tpu_custom_call.1} parent=1 // pred_check_branch
      %46 = sbr.rel (0) target = $region37
    $region36: #{tpu_custom_call.1} parent=1 // pred_region
      %47 = dma.done [#allocation4], 512
    $region37: #{tpu_custom_call.1} parent=1 // pred_fallthru
      _
    %v48 = vld [vmem:[%s1] sm:$0xff]
    %v49 = vld [vmem:[%s1 + $0x8] sm:$0xff]
    %v50 = vld [vmem:[%s1 + $0x10] sm:$0xff]
    %v51 = vld [vmem:[%s1 + $0x18] sm:$0xff]
    %v52 = vld [vmem:[#allocation3] sm:$0xff]
    %v53 = vld [vmem:[#allocation3 + $0x8] sm:$0xff]
    %v54 = vld [vmem:[#allocation3 + $0x10] sm:$0xff]
    %v55 = vld [vmem:[#allocation3 + $0x18] sm:$0xff]
    %vm56 = vcmask 261120
    %v58 = vsel %vm56, %v48, 0
    %v61 = vsel %vm56, %v49, 0
    %v64 = vsel %vm56, %v50, 0
    %v67 = vsel %vm56, %v51, 0
    %69 = vmatprep.subr.mxu0 0.0
    %70 = vmatpush1.msra.mxu0 0.0
    %71 = vmatprep.subr.mxu0 0.0
    %72 = vmatpush1.msra.mxu0 0.0
    %73 = vmatprep.subr.mxu0 0.0
    %74 = vmatpush1.msra.mxu0 0.0
    %75 = vmatprep.subr.mxu0 0.0
    %76 = vmatpush1.msra.mxu0 0.0
    %77 = vmatprep.subr.mxu0 0.0
    %78 = vmatpush1.msra.mxu0 0.0
    %79 = vmatprep.subr.mxu0 0.0
    %80 = vmatpush1.msra.mxu0 0.0
    %81 = vmatprep.subr.mxu0 0.0
    %82 = vmatpush1.msra.mxu0 0.0
    %83 = vmatprep.subr.mxu0 0.0
    %84 = vmatpush1.msra.mxu0 0.0
    %85 = vmatprep.subr.mxu0 0.0
    %86 = vmatpush1.msra.mxu0 0.0
    %87 = vmatprep.subr.mxu0 0.0
    %88 = vmatpush1.msra.mxu0 0.0
    %89 = vmatprep.subr.mxu0 0.0
    %90 = vmatpush1.msra.mxu0 0.0
    %91 = vmatprep.subr.mxu0 0.0
    %92 = vmatpush1.msra.mxu0 0.0
    %93 = vmatprep.subr.mxu0 0.0
    %94 = vmatpush1.msra.mxu0 %v55
    %95 = vmatprep.subr.mxu0 0.0
    %96 = vmatpush1.msra.mxu0 %v54
    %97 = vmatprep.subr.mxu0 0.0
    %98 = vmatpush1.msra.mxu0 %v53
    %99 = vmatprep.subr.mxu0 0.0
    %100 = vmatpush1.msra.mxu0 %v52
    %101 = vmatprep.subr.mxu0 0.0
    %102 = vmatpush2.msra.mxu0 0.0
    %103 = vmatprep.subr.mxu0 0.0
    %104 = vmatpush2.msra.mxu0 0.0
    %105 = vmatprep.subr.mxu0 0.0
    %106 = vmatpush2.msra.mxu0 0.0
    %107 = vmatprep.subr.mxu0 0.0
    %108 = vmatpush2.msra.mxu0 0.0
    %109 = vmatprep.subr.mxu0 0.0
    %110 = vmatpush2.msra.mxu0 0.0
    %111 = vmatprep.subr.mxu0 0.0
    %112 = vmatpush2.msra.mxu0 0.0
    %113 = vmatprep.subr.mxu0 0.0
    %114 = vmatpush2.msra.mxu0 0.0
    %115 = vmatprep.subr.mxu0 0.0
    %116 = vmatpush2.msra.mxu0 0.0
    %117 = vmatprep.subr.mxu0 0.0
    %118 = vmatpush2.msra.mxu0 0.0
    %119 = vmatprep.subr.mxu0 0.0
    %120 = vmatpush2.msra.mxu0 0.0
    %121 = vmatprep.subr.mxu0 0.0
    %122 = vmatpush2.msra.mxu0 0.0
    %123 = vmatprep.subr.mxu0 0.0
    %124 = vmatpush2.msra.mxu0 0.0
    %125 = vmatprep.subr.mxu0 0.0
    %126 = vmatpush2.msra.mxu0 0.0
    %127 = vmatprep.subr.mxu0 0.0
    %128 = vmatpush2.msra.mxu0 0.0
    %129 = vmatprep.subr.mxu0 0.0
    %130 = vmatpush2.msra.mxu0 0.0
    %131 = vmatprep.subr.mxu0 0.0
    %132 = vmatpush2.msra.mxu0 0.0
    %133 = vmatprep.mubr.f32.mxu0 0.0
    %134 = vmatmul.mubr.f32.gmra.mxu0 %v58
    %v135 = vpop.f32.mrf.mxu0
    %v136 = vadd.f32 0.0, %v135
    %v137 = vpop.f32.mrf.mxu0
    %138 = vmatprep.mubr.f32.mxu0 0.0
    %139 = vmatmul.mubr.f32.gmra.mxu0 %v61
    %v140 = vpop.f32.mrf.mxu0
    %v141 = vadd.f32 0.0, %v140
    %v142 = vpop.f32.mrf.mxu0
    %143 = vmatprep.mubr.f32.mxu0 0.0
    %144 = vmatmul.mubr.f32.gmra.mxu0 %v64
    %v145 = vpop.f32.mrf.mxu0
    %v146 = vadd.f32 0.0, %v145
    %v147 = vpop.f32.mrf.mxu0
    %148 = vmatprep.mubr.f32.mxu0 0.0
    %149 = vmatmul.mubr.f32.gmra.mxu0 %v67
    %v150 = vpop.f32.mrf.mxu0
    %v151 = vadd.f32 0.0, %v150
    %v152 = vpop.f32.mrf.mxu0
    %153 = vdwg.mxu0
    %v154 = vld [vmem:[%s2] sm:$0xff]
    %v155 = vld [vmem:[%s2 + $0x8] sm:$0xff]
    %v156 = vld [vmem:[%s2 + $0x10] sm:$0xff]
    %v157 = vld [vmem:[%s2 + $0x18] sm:$0xff]
    %v158 = vld [vmem:[%s4] sm:$0x7]
    %160 = vset.pattern.permute.xlu0 0
    %161 = vperm.xlu0 %160, %v154
    %v162 = vpop.permute.xlu0 %161
    %165 = vset.pattern.permute.xlu0 0
    %166 = vperm.xlu0 %165, %v155
    %v167 = vpop.permute.xlu0 %166
    %170 = vset.pattern.permute.xlu0 0
    %171 = vperm.xlu0 %170, %v156
    %v172 = vpop.permute.xlu0 %171
    %175 = vset.pattern.permute.xlu0 0
    %176 = vperm.xlu0 %175, %v157
    %v177 = vpop.permute.xlu0 %176
    %v179 = vlaneseq
    %v180 = vshrl.u32 %v179, 7
    %v181 = vsub.s32 0, %v180
    %v182 = vrot.slane %v158, %v181
    %v183 = vmul.f32 %v162, %v182
    %v184 = vmul.f32 %v167, %v182
    %v185 = vmul.f32 %v172, %v182
    %v186 = vmul.f32 %v177, %v182
    %187 = vset.pattern.permute.xlu0 1
    %188 = vperm.xlu0 %187, %v154
    %v189 = vpop.permute.xlu0 %188
    %191 = vset.pattern.permute.xlu0 1
    %192 = vperm.xlu0 %191, %v155
    %v193 = vpop.permute.xlu0 %192
    %195 = vset.pattern.permute.xlu0 1
    %196 = vperm.xlu0 %195, %v156
    %v197 = vpop.permute.xlu0 %196
    %199 = vset.pattern.permute.xlu0 1
    %200 = vperm.xlu0 %199, %v157
    %v201 = vpop.permute.xlu0 %200
    %v203 = vlaneseq
    %v204 = vshrl.u32 %v203, 7
    %v205 = vsub.s32 1, %v204
    %v206 = vrot.slane %v158, %v205
    %v207 = vmul.f32 %v189, %v206
    %v208 = vmul.f32 %v193, %v206
    %v209 = vmul.f32 %v197, %v206
    %v210 = vmul.f32 %v201, %v206
    %v211 = vadd.f32 %v183, %v207
    %v212 = vadd.f32 %v184, %v208
    %v213 = vadd.f32 %v185, %v209
    %v214 = vadd.f32 %v186, %v210
    %215 = vset.pattern.permute.xlu0 2
    %216 = vperm.xlu0 %215, %v154
    %v217 = vpop.permute.xlu0 %216
    %219 = vset.pattern.permute.xlu0 2
    %220 = vperm.xlu0 %219, %v155
    %v221 = vpop.permute.xlu0 %220
    %223 = vset.pattern.permute.xlu0 2
    %224 = vperm.xlu0 %223, %v156
    %v225 = vpop.permute.xlu0 %224
    %227 = vset.pattern.permute.xlu0 2
    %228 = vperm.xlu0 %227, %v157
    %v229 = vpop.permute.xlu0 %228
    %v231 = vlaneseq
    %v232 = vshrl.u32 %v231, 7
    %v233 = vsub.s32 2, %v232
    %v234 = vrot.slane %v158, %v233
    %v235 = vmul.f32 %v217, %v234
    %v236 = vmul.f32 %v221, %v234
    %v237 = vmul.f32 %v225, %v234
    %v238 = vmul.f32 %v229, %v234
    %v239 = vadd.f32 %v211, %v235
    %v240 = vadd.f32 %v212, %v236
    %v241 = vadd.f32 %v213, %v237
    %v242 = vadd.f32 %v214, %v238
    %v243 = vadd.f32 %v136, %v239
    %v244 = vadd.f32 %v141, %v240
    %v245 = vadd.f32 %v146, %v241
    %v246 = vadd.f32 %v151, %v242
    %v247 = vld [vmem:[%s0] sm:$0x1]
    %v248 = vld [vmem:[%s0 + $0x1] sm:$0x1]
    %v251 = vlaneseq
    %v252 = vshrl.u32 %v251, 7
    %v253 = vsub.s32 0, %v252
    %v254 = vrot.slane %v247, %v253
    %v255 = vlaneseq
    %v256 = vshrl.u32 %v255, 7
    %v257 = vsub.s32 0, %v256
    %v258 = vrot.slane %v248, %v257
    %v261 = vadd.f32 %v243, %v254
    %v262 = vadd.f32 %v244, %v254
    %v263 = vadd.f32 %v245, %v258
    %v264 = vadd.f32 %v246, %v258
    %v265 = vld [vmem:[%s5] sm:$0x1]
    %v267 = vlaneseq
    %v268 = vshrl.u32 %v267, 7
    %v269 = vsub.s32 0, %v268
    %v270 = vrot.slane %v265, %v269
    %v272 = vadd.f32 %v261, %v270
    %v273 = vadd.f32 %v262, %v270
    %v274 = vadd.f32 %v263, %v270
    %v275 = vadd.f32 %v264, %v270
    %v276 = vtanh.pop %v272
    %v277 = vtanh.pop %v273
    %v278 = vtanh.pop %v274
    %v279 = vtanh.pop %v275
    %v280 = vld [vmem:[%s6] sm:$0x1]
    %v282 = vlaneseq
    %v283 = vshrl.u32 %v282, 7
    %v284 = vsub.s32 0, %v283
    %v285 = vrot.slane %v280, %v284
    %v287 = vmul.f32 %v276, %v285
    %v288 = vmul.f32 %v277, %v285
    %v289 = vmul.f32 %v278, %v285
    %v290 = vmul.f32 %v279, %v285
    %v291 = vsel %vm56, %v287, 0.0
    %292 = vadd.xlane.f32.xlu0 %v291
    %v293 = vpop.xlane.xlu0 %292
    %v294 = vsel %vm56, %v288, 0.0
    %295 = vadd.xlane.f32.xlu0 %v294
    %v296 = vpop.xlane.xlu0 %295
    %v297 = vsel %vm56, %v289, 0.0
    %298 = vadd.xlane.f32.xlu0 %v297
    %v299 = vpop.xlane.xlu0 %298
    %v300 = vsel %vm56, %v290, 0.0
    %301 = vadd.xlane.f32.xlu0 %v300
    %v302 = vpop.xlane.xlu0 %301
    %s303 = sld [smem:[#allocation2]]
    %v304 = vstv %s303
    %v305 = vadd.f32 %v293, %v304
    %v306 = vadd.f32 %v296, %v304
    %v307 = vadd.f32 %v299, %v304
    %v308 = vadd.f32 %v302, %v304
    %v309 = vxor.u32 %v305, 2147483648
    %v310 = vxor.u32 %v306, 2147483648
    %v311 = vxor.u32 %v307, 2147483648
    %v312 = vxor.u32 %v308, 2147483648
    %v313 = vmul.f32 %v309, 1.442695
    %v314 = vpow.pop %v313
    %v315 = vmul.f32 %v310, 1.442695
    %v316 = vpow.pop %v315
    %v317 = vmul.f32 %v311, 1.442695
    %v318 = vpow.pop %v317
    %v319 = vmul.f32 %v312, 1.442695
    %v320 = vpow.pop %v319
    %v321 = vadd.f32 %v314, 1.0
    %v322 = vadd.f32 %v316, 1.0
    %v323 = vadd.f32 %v318, 1.0
    %v324 = vadd.f32 %v320, 1.0
    %v325 = vrcp.pop %v321
    %v326 = vmul.f32 1.0, %v325
    %v327 = vrcp.pop %v322
    %v328 = vmul.f32 1.0, %v327
    %v329 = vrcp.pop %v323
    %v330 = vmul.f32 1.0, %v329
    %v331 = vrcp.pop %v324
    %v332 = vmul.f32 1.0, %v331
    %v337 = vlaneseq
    %v338 = vand.u32 %v337, 127
    %v339 = vlaneseq
    %v340 = vshrl.u32 %v339, 7
    %v341 = vsub.s32 %v338, %v340
    %v342 = vrot.slane %v326, %v341
    %v343 = vadd.s32 %v338, 4294967288
    %v344 = vlaneseq
    %v345 = vshrl.u32 %v344, 7
    %v346 = vsub.s32 %v343, %v345
    %v347 = vrot.slane %v328, %v346
    %vm348 = vcmask 130112
    %v349 = vsel %vm348, %v347, %v342
    %v350 = vlaneseq
    %v351 = vshrl.u32 %v350, 7
    %v352 = vsub.s32 %v338, %v351
    %v353 = vrot.slane %v330, %v352
    %v354 = vlaneseq
    %v355 = vshrl.u32 %v354, 7
    %v356 = vsub.s32 %v343, %v355
    %v357 = vrot.slane %v332, %v356
    %v358 = vsel %vm348, %v357, %v353
    %vm359 = vcmask 1041409
    %v360 = vsel %vm359, %v358, %v349
    %vm362 = vcmask 123904
    %v363 = vsel %vm362, %v360, 0.0
    %364 = vadd.xlane.f32.xlu0 %v363
    %v365 = vpop.xlane.xlu0 %364
    %v366 = vrcp.pop %v365
    %v368 = vlaneseq
    %v369 = vshrl.u32 %v368, 7
    %v370 = vsub.s32 0, %v369
    %v371 = vrot.slane %v366, %v370
    %v372 = vlaneseq
    %v373 = vshrl.u32 %v372, 7
    %v374 = vsub.s32 1, %v373
    %v375 = vrot.slane %v366, %v374
    %v378 = vmul.f32 %v326, %v371
    %v379 = vmul.f32 %v328, %v371
    %v380 = vmul.f32 %v330, %v375
    %v381 = vmul.f32 %v332, %v375
    %386 = vset.pattern.permute.xlu0 0
    %387 = vperm.xlu0 %386, %v378
    %v388 = vpop.permute.xlu0 %387
    %389 = vset.pattern.permute.xlu0 0
    %390 = vperm.xlu0 %389, %v379
    %v391 = vpop.permute.xlu0 %390
    %392 = vset.pattern.permute.xlu0 0
    %393 = vperm.xlu0 %392, %v380
    %v394 = vpop.permute.xlu0 %393
    %395 = vset.pattern.permute.xlu0 0
    %396 = vperm.xlu0 %395, %v381
    %v397 = vpop.permute.xlu0 %396
    %v398 = vlaneseq
    %v399 = vshrl.u32 %v398, 7
    %v400 = vsub.s32 %v338, %v399
    %v401 = vrot.slane %v388, %v400
    %v402 = vlaneseq
    %v403 = vshrl.u32 %v402, 7
    %v404 = vsub.s32 %v343, %v403
    %v405 = vrot.slane %v391, %v404
    %v406 = vsel %vm348, %v405, %v401
    %v407 = vlaneseq
    %v408 = vshrl.u32 %v407, 7
    %v409 = vsub.s32 %v338, %v408
    %v410 = vrot.slane %v394, %v409
    %v411 = vlaneseq
    %v412 = vshrl.u32 %v411, 7
    %v413 = vsub.s32 %v343, %v412
    %v414 = vrot.slane %v397, %v413
    %v415 = vsel %vm348, %v414, %v410
    %v416 = vsel %vm359, %v415, %v406
    %418 = vst.msk [vmem:[#allocation7] sm:$0x3] %vm362, %v416
    %v423 = vmul.f32 %v388, %v48
    %v424 = vmul.f32 %v391, %v49
    %v425 = vmul.f32 %v394, %v50
    %v426 = vmul.f32 %v397, %v51
    %v427 = vsel %vm56, %v423, 0.0
    %v428 = vsel %vm56, %v424, 0.0
    %v429 = vadd.f32 %v427, %v428
    %v430 = vrot.slane %v429, 4
    %v431 = vadd.f32 %v429, %v430
    %v432 = vrot.slane %v431, 2
    %v433 = vadd.f32 %v431, %v432
    %v434 = vrot.slane %v433, 1
    %v435 = vadd.f32 %v433, %v434
    %v436 = vsel %vm56, %v425, 0.0
    %v437 = vsel %vm56, %v426, 0.0
    %v438 = vadd.f32 %v436, %v437
    %v439 = vrot.slane %v438, 4
    %v440 = vadd.f32 %v438, %v439
    %v441 = vrot.slane %v440, 2
    %v442 = vadd.f32 %v440, %v441
    %v443 = vrot.slane %v442, 1
    %v444 = vadd.f32 %v442, %v443
    %v447 = vsel %vm359, %v444, %v435
    %vm449 = vcmask 254976
    %450 = vst.msk [vmem:[#allocation6] sm:$0x3] %vm449, %v447
    // Predicated region
    $region38: #{tpu_custom_call.1} parent=1 // pred_check
      _
    $region39: #{tpu_custom_call.1} parent=1 // pred_check_branch
      %452 = sbr.rel (0) target = $region41
    $region40: #{tpu_custom_call.1} parent=1 // pred_region
      %s454 = ssub.s32 32, 32
      %455 = vsyncadd [#allocation5], %s454
      %s457 = sshll.u32 [#allocation6], 4
      %s458 = int_to_ptr.vmem [resolvable:$true] %s457
      %460 = dma.vmem_to_hbm [thread:$0]  %s458, 32, %s8, [#allocation5]
    $region41: #{tpu_custom_call.1} parent=1 // pred_fallthru
      _
    // Predicated region
    $region42: #{tpu_custom_call.1} parent=1 // pred_check
      _
    $region43: #{tpu_custom_call.1} parent=1 // pred_check_branch
      %462 = sbr.rel (0) target = $region45
    $region44: #{tpu_custom_call.1} parent=1 // pred_region
      %s464 = ssub.s32 32, 32
      %465 = vsyncadd [#allocation8], %s464
      %s467 = sshll.u32 [#allocation7], 4
      %s468 = int_to_ptr.vmem [resolvable:$true] %s467
      %470 = dma.vmem_to_hbm [thread:$0]  %s468, 32, %s9, [#allocation8]
    $region45: #{tpu_custom_call.1} parent=1 // pred_fallthru
      _
    // Predicated region
    $region46: #{tpu_custom_call.1} parent=1 // pred_check
      _
    $region47: #{tpu_custom_call.1} parent=1 // pred_check_branch
      %472 = sbr.rel (0) target = $region49
    $region48: #{tpu_custom_call.1} parent=1 // pred_region
      %473 = dma.done [#allocation5], 32
    $region49: #{tpu_custom_call.1} parent=1 // pred_fallthru
      _
    // Predicated region
    $region50: #{tpu_custom_call.1} parent=1 // pred_check
      _
    $region51: #{tpu_custom_call.1} parent=1 // pred_check_branch
      %475 = sbr.rel (0) target = $region53
    $region52: #{tpu_custom_call.1} parent=1 // pred_region
      %476 = dma.done [#allocation8], 32
    $region53: #{tpu_custom_call.1} parent=1 // pred_fallthru
      _
    %477 = vsyncpa [#allocation4], 1
    %478 = vsyncpa [#allocation5], 1
    %479 = vsyncpa [#allocation8], 1

</llo_original>
